<compile_context>
chip_gen: v6e
topology: v6e:2x2x1
jax: 0.10.0
libtpu: 0.0.40
codegen_flags: <defaults>
</compile_context>

<pallas_src>
import jax
import jax.numpy as jnp
from jax.experimental import pallas as pl
from jax.experimental.pallas import tpu as pltpu

EPS = 1e-10
_LANES = 128
_SUBLANES = 8


def _round_up(a: int, b: int) -> int:
    return -(-a // b) * b


def _make_bce_kernel(tile_rows: int, total: int, needs_mask: bool):
    """Per-tile kernel: reduce a (tile_rows, 128) tile of x / y to an (8, 128)
    partial sum of  y*log(x+eps) + (1-y)*log(1-x+eps)."""
    sub_tiles = tile_rows // _SUBLANES

    def kernel(x_ref, y_ref, o_ref):
        x = x_ref[...].astype(jnp.float32)
        y = y_ref[...].astype(jnp.float32)
        # Both log terms are kept (soft-label safe); one fused elementwise pass.
        elem = y * jnp.log(x + EPS) + (1.0 - y) * jnp.log(1.0 - x + EPS)
        if needs_mask:
            # Static specialization: only compiled in when some tile is ragged
            # (lane-tail padding and/or out-of-bounds rows in the last block).
            row = jax.lax.broadcasted_iota(jnp.int32, (tile_rows, _LANES), 0)
            lane = jax.lax.broadcasted_iota(jnp.int32, (tile_rows, _LANES), 1)
            flat = (pl.program_id(0) * tile_rows + row) * _LANES + lane
            # Select (not multiply): NaN/garbage in masked lanes cannot leak.
            elem = jnp.where(flat < total, elem, 0.0)
        # Sublane-grouped partial sum: per-lane VPU adds only.
        o_ref[...] = jnp.sum(elem.reshape(sub_tiles, _SUBLANES, _LANES), axis=0)

    return kernel


def bce_loss(x, y, *, tile_rows: int = 2048):
    """BCELoss forward.  x, y: (N, 2) arrays.  Returns a float32 scalar.

    Accepts f32 or narrower inputs; accumulation is always f32 in-kernel.
    """
    assert x.shape[-1] == 2, "input should be binary predictions"
    assert x.shape == y.shape

    n = x.shape[0]           # global N used for normalization (static)
    total = x.size           # == 2 * n, true element count

    # Lane-dense flat view (free reshape of the flat buffer).
    xf = x.reshape(-1)
    yf = y.reshape(-1)
    rows = pl.cdiv(total, _LANES)
    lane_pad = rows * _LANES - total
    if lane_pad:
        # Only a <128-element tail pad, and only when 2N % 128 != 0; the padded
        # values are masked out inside the kernel so their contents don't matter.
        xf = jnp.concatenate([xf, jnp.zeros((lane_pad,), xf.dtype)])
        yf = jnp.concatenate([yf, jnp.zeros((lane_pad,), yf.dtype)])
    x2 = xf.reshape(rows, _LANES)
    y2 = yf.reshape(rows, _LANES)

    # Packed-sublane granularity for sub-32-bit dtypes (bf16 -> 16, 8-bit -> 32).
    itemsize = jnp.dtype(x.dtype).itemsize
    row_align = _SUBLANES * max(1, 4 // max(1, itemsize))

    # 1-2 MiB f32 input blocks amortize per-grid-step overhead; cap at 4096 rows
    # so 2 inputs x 2 pipeline buffers stay inside every generation's scoped
    # VMEM default (v5e 16 MiB, v6e/v7x 32 MiB).
    tile_rows = max(row_align, min(int(tile_rows), 4096))
    tile_rows = _round_up(tile_rows, row_align)
    tile_rows = min(tile_rows, _round_up(rows, row_align))
    num_tiles = pl.cdiv(rows, tile_rows)

    needs_mask = (num_tiles * tile_rows * _LANES) != total

    partials = pl.pallas_call(
        _make_bce_kernel(tile_rows, total, needs_mask),
        out_shape=jax.ShapeDtypeStruct((num_tiles * _SUBLANES, _LANES),
                                       jnp.float32),
        grid=(num_tiles,),
        in_specs=[
            pl.BlockSpec((tile_rows, _LANES), lambda i: (i, 0)),
            pl.BlockSpec((tile_rows, _LANES), lambda i: (i, 0)),
        ],
        out_specs=pl.BlockSpec((_SUBLANES, _LANES), lambda i: (i, 0)),
        compiler_params=pltpu.CompilerParams(
            dimension_semantics=("parallel",)),
    )(x2, y2)

    # Tiny final reduction (num_tiles*8*128 partials) + single -0.5/N scale.
    return jnp.sum(partials) * (-0.5 / n)


def bce_loss_ref(x, y):
    """Pure-JAX reference matching the PyTorch module semantics."""
    x = x.astype(jnp.float32)
    y = y.astype(jnp.float32)
    n = y.shape[0]
    positive_loss = -(y * jnp.log(x + EPS)).sum() / n
    negative_loss = -((1.0 - y) * jnp.log(1.0 - x + EPS)).sum() / n
    return (positive_loss + negative_loss) / 2.0


if __name__ == "__main__":
    key = jax.random.PRNGKey(0)

    def make_case(k, n):
        kx, ky = jax.random.split(k)
        xs = jax.random.uniform(kx, (n, 2), dtype=jnp.float32,
                                minval=0.01, maxval=0.99)
        ys = (jax.random.uniform(ky, (n, 2)) > 0.5).astype(jnp.float32)
        return xs, ys

    k1, k2, k3, k4 = jax.random.split(key, 4)

    # Case 1: tiny (N, 2) binary predictions; ragged lane tail (2N % 128 != 0).
    x1, y1 = make_case(k1, 8)
    out1 = jax.block_until_ready(bce_loss(x1, y1))
    ref1 = bce_loss_ref(x1, y1)
    assert jnp.allclose(out1, ref1, rtol=1e-4, atol=1e-6), (out1, ref1)

    # Case 2: lane-aligned, single tile, unmasked fast path.
    x2, y2 = make_case(k2, 512)
    out2 = jax.block_until_ready(bce_loss(x2, y2))
    ref2 = bce_loss_ref(x2, y2)
    assert jnp.allclose(out2, ref2, rtol=1e-4, atol=1e-6), (out2, ref2)

    # Case 3: several tiles with a ragged last tile (forces the in-kernel mask).
    x3, y3 = make_case(k3, 3000)
    out3 = jax.block_until_ready(bce_loss(x3, y3, tile_rows=16))
    ref3 = bce_loss_ref(x3, y3)
    assert jnp.allclose(out3, ref3, rtol=1e-4, atol=1e-6), (out3, ref3)

    # Case 4: multi-tile, exactly dividing grid (unmasked multi-block path).
    x4, y4 = make_case(k4, 8192)
    out4 = jax.block_until_ready(bce_loss(x4, y4, tile_rows=32))
    ref4 = bce_loss_ref(x4, y4)
    assert jnp.allclose(out4, ref4, rtol=1e-4, atol=1e-6), (out4, ref4)

    print("KERNEL_OK")
</pallas_src>

<mosaic_0001>
module attributes {stable_mosaic.version = 11 : i64} {
  func.func @kernel(%arg0: i32, %arg1: memref<8x128xf32, #tpu.memory_space<vmem>>, %arg2: memref<8x128xf32, #tpu.memory_space<vmem>>, %arg3: memref<8x128xf32, #tpu.memory_space<vmem>>) attributes {dimension_semantics = [#tpu.dimension_semantics<parallel>], iteration_bounds = array<i64: 1>, scalar_prefetch = 0 : i64, scratch_operands = 0 : i64, tpu.core_type = #tpu.core_type<tc>, window_params = [{transform_indices = @transform_0, window_bounds = array<i64: 8, 128>}, {transform_indices = @transform_1, window_bounds = array<i64: 8, 128>}, {transform_indices = @transform_2, window_bounds = array<i64: 8, 128>}]} {
    %c0 = arith.constant 0 : index
    %c0_0 = arith.constant 0 : index
    %0 = vector.load %arg1[%c0, %c0_0] : memref<8x128xf32, #tpu.memory_space<vmem>>, vector<8x128xf32>
    %c0_1 = arith.constant 0 : index
    %c0_2 = arith.constant 0 : index
    %1 = vector.load %arg2[%c0_1, %c0_2] : memref<8x128xf32, #tpu.memory_space<vmem>>, vector<8x128xf32>
    %cst = arith.constant 1.000000e-10 : f32
    %2 = vector.broadcast %cst : f32 to vector<8x128xf32>
    %3 = arith.addf %0, %2 : vector<8x128xf32>
    %4 = math.log %3 : vector<8x128xf32>
    %5 = arith.mulf %1, %4 : vector<8x128xf32>
    %cst_3 = arith.constant 1.000000e+00 : f32
    %6 = vector.broadcast %cst_3 : f32 to vector<8x128xf32>
    %7 = arith.subf %6, %1 : vector<8x128xf32>
    %cst_4 = arith.constant 1.000000e+00 : f32
    %8 = vector.broadcast %cst_4 : f32 to vector<8x128xf32>
    %9 = arith.subf %8, %0 : vector<8x128xf32>
    %cst_5 = arith.constant 1.000000e-10 : f32
    %10 = vector.broadcast %cst_5 : f32 to vector<8x128xf32>
    %11 = arith.addf %9, %10 : vector<8x128xf32>
    %12 = math.log %11 : vector<8x128xf32>
    %13 = arith.mulf %7, %12 : vector<8x128xf32>
    %14 = arith.addf %5, %13 : vector<8x128xf32>
    %15 = tpu.iota {dimensions = array<i32: 0>} : vector<8x128xi32>
    %16 = tpu.iota {dimensions = array<i32: 1>} : vector<8x128xi32>
    %c8_i32 = arith.constant 8 : i32
    %17 = arith.muli %arg0, %c8_i32 : i32
    %18 = vector.broadcast %17 : i32 to vector<8x128xi32>
    %19 = arith.addi %18, %15 : vector<8x128xi32>
    %c128_i32 = arith.constant 128 : i32
    %20 = vector.broadcast %c128_i32 : i32 to vector<8x128xi32>
    %21 = arith.muli %19, %20 : vector<8x128xi32>
    %22 = arith.addi %21, %16 : vector<8x128xi32>
    %c16_i32 = arith.constant 16 : i32
    %23 = vector.broadcast %c16_i32 : i32 to vector<8x128xi32>
    %24 = arith.cmpi slt, %22, %23 : vector<8x128xi32>
    %cst_6 = arith.constant 0.000000e+00 : f32
    %25 = vector.broadcast %cst_6 : f32 to vector<8x128xf32>
    %26 = arith.select %24, %14, %25 : vector<8x128xi1>, vector<8x128xf32>
    %27 = vector.shape_cast %26 : vector<8x128xf32> to vector<1x8x128xf32>
    %cst_7 = arith.constant dense<0.000000e+00> : vector<8x128xf32>
    %28 = vector.multi_reduction <add>, %27, %cst_7 [0] : vector<1x8x128xf32> to vector<8x128xf32>
    %c0_8 = arith.constant 0 : index
    %c0_9 = arith.constant 0 : index
    %29 = vector.load %arg3[%c0_8, %c0_9] : memref<8x128xf32, #tpu.memory_space<vmem>>, vector<8x128xf32>
    tpu.vector_store %arg3[%c0_8, %c0_9], %28 {strides = array<i32>} : memref<8x128xf32, #tpu.memory_space<vmem>>, vector<8x128xf32>,
    return
  }
  func.func @transform_0(%arg0: i32) -> (i32, i32) {
    %c0_i32 = arith.constant 0 : i32
    %c0_i32_0 = arith.constant 0 : i32
    return %arg0, %c0_i32 : i32, i32
  }
  func.func @transform_1(%arg0: i32) -> (i32, i32) {
    %c0_i32 = arith.constant 0 : i32
    %c0_i32_0 = arith.constant 0 : i32
    return %arg0, %c0_i32 : i32, i32
  }
  func.func @transform_2(%arg0: i32) -> (i32, i32) {
    %c0_i32 = arith.constant 0 : i32
    %c0_i32_0 = arith.constant 0 : i32
    return %arg0, %c0_i32 : i32, i32
  }
}

</mosaic_0001>

<llo_original>
// kernel: tpu_custom_call.1
$region0: #{tpu_custom_call.1}
  #allocation0 [shape = 'u32[]', space=smem, size = 0x4, offset = 0x4, fixed_abs, tag = 'smem constant byte address 0x4 - core index']
  #allocation1 [shape = 'u32[144,128]{1,0:T(1,128)}', space=vmem, size = 0x12000, scoped, tag = 'internal scratch']
  %s0 = inlined_call_operand.hbm [shape: f32[1,128], index: 0, kind: input, shape index: {}]
  %s1 = inlined_call_operand.vmem [shape: f32[1,128], index: 1, kind: input, shape index: {}]
  %s2 = inlined_call_operand.hbm [shape: f32[8,128], index: 2, kind: output, shape index: {}]
  %s3 = sld [smem:[#allocation0]]
  $region22: #{tpu_custom_call.1} parent=0
    _
  %s5 = ssub.s32 1, %s3
  %s6 = scalar_select 0, %s5, %s3
  $region1: #{tpu_custom_call.1} parent=0
    #allocation2 [shape = 'u8[4096]{0}', space=vmem, size = 0x1000, scoped, tag = 'input window, operand 0, single buffered']
    #allocation3 [shape = 's32[1]{0}', space=sflag, size = 0x4, scoped, tag = 'scoped memory for tpu_custom_call.1']
    #allocation4 [shape = 's32[1]{0}', space=sflag, size = 0x4, scoped, tag = 'scoped memory for tpu_custom_call.1']
    #allocation5 [shape = 'u8[4096]{0}', space=vmem, size = 0x1000, scoped, tag = 'output window, operand 0, single buffered']
    %7 = vsyncpa [#allocation3], 0
    %8 = vsyncpa [#allocation4], 0
    // Predicated region
    $region2: #{tpu_custom_call.1} parent=1 // pred_check
      _
    $region3: #{tpu_custom_call.1} parent=1 // pred_check_branch
      %10 = sbr.rel (0) target = $region5
    $region4: #{tpu_custom_call.1} parent=1 // pred_region
      %s12 = ssub.s32 128, 16
      %13 = vsyncadd [#allocation3], %s12
      %s14 = sshll.u32 [#allocation2], 4
      %s15 = int_to_ptr.vmem [resolvable:$true] %s14
      %20 = dma.hbm_to_vmem [thread:$0]  %s0, 16, %s15, [#allocation3], 16, 16, 1
    $region5: #{tpu_custom_call.1} parent=1 // pred_fallthru
      _
    // Predicated region
    $region6: #{tpu_custom_call.1} parent=1 // pred_check
      _
    $region7: #{tpu_custom_call.1} parent=1 // pred_check_branch
      %22 = sbr.rel (0) target = $region9
    $region8: #{tpu_custom_call.1} parent=1 // pred_region
      _
    $region9: #{tpu_custom_call.1} parent=1 // pred_fallthru
      _
    // Predicated region
    $region10: #{tpu_custom_call.1} parent=1 // pred_check
      _
    $region11: #{tpu_custom_call.1} parent=1 // pred_check_branch
      %24 = sbr.rel (0) target = $region13
    $region12: #{tpu_custom_call.1} parent=1 // pred_region
      %25 = dma.done [#allocation3], 128
    $region13: #{tpu_custom_call.1} parent=1 // pred_fallthru
      _
    %v26 = vld [vmem:[#allocation2] sm:$0xff]
    %v27 = vld [vmem:[%s1] sm:$0xff]
    %v28 = vadd.f32 %v26, 1e-10
    %v29 = vlog2.pop %v28
    %v30 = vmul.f32 %v29, 0.6931472
    %v31 = vmul.f32 %v27, %v30
    %v32 = vsub.f32 1.0, %v27
    %v33 = vsub.f32 1.0, %v26
    %v34 = vadd.f32 %v33, 1e-10
    %v35 = vlog2.pop %v34
    %v36 = vmul.f32 %v35, 0.6931472
    %v37 = vmul.f32 %v32, %v36
    %v38 = vadd.f32 %v31, %v37
    %v39 = vlaneseq
    %v40 = vshrl.u32 %v39, 7
    %v41 = vlaneseq
    %v42 = vand.u32 %v41, 127
    %s43 = smul.u32 0, 8
    %v44 = vstv %s43
    %v45 = vadd.s32 %v44, %v40
    %v46 = vmul.u32 %v45, 128
    %v47 = vadd.s32 %v46, %v42
    %vm48 = vcmp.lt.s32.totalorder %v47, 16
    %v49 = vsel %vm48, %v38, 0.0
    %v50 = vadd.f32 %v49, 0.0
    %51 = vst [vmem:[#allocation5] sm:$0xff] %v50
    // Predicated region
    $region14: #{tpu_custom_call.1} parent=1 // pred_check
      _
    $region15: #{tpu_custom_call.1} parent=1 // pred_check_branch
      %53 = sbr.rel (0) target = $region17
    $region16: #{tpu_custom_call.1} parent=1 // pred_region
      %s55 = ssub.s32 128, 128
      %56 = vsyncadd [#allocation4], %s55
      %s58 = sshll.u32 [#allocation5], 4
      %s59 = int_to_ptr.vmem [resolvable:$true] %s58
      %61 = dma.vmem_to_hbm [thread:$0]  %s59, 128, %s2, [#allocation4]
    $region17: #{tpu_custom_call.1} parent=1 // pred_fallthru
      _
    // Predicated region
    $region18: #{tpu_custom_call.1} parent=1 // pred_check
      _
    $region19: #{tpu_custom_call.1} parent=1 // pred_check_branch
      %63 = sbr.rel (0) target = $region21
    $region20: #{tpu_custom_call.1} parent=1 // pred_region
      %64 = dma.done [#allocation4], 128
    $region21: #{tpu_custom_call.1} parent=1 // pred_fallthru
      _
    %65 = vsyncpa [#allocation3], 1
    %66 = vsyncpa [#allocation4], 1

</llo_original>
